<compile_context>
chip_gen: v7x
topology: tpu7x:2x2x1
jax: 0.10.0
libtpu: 0.0.40
codegen_flags: <defaults>
</compile_context>

<pallas_src>
import functools

import jax
import jax.numpy as jnp
from jax import lax
from jax.experimental import pallas as pl
from jax.experimental.pallas import tpu as pltpu

_LANE = 128
_MIN_SPLIT_BYTES = 2 * 1024 * 1024   # above this, force >= 2 grid steps (2 TCs on v7x)


@functools.lru_cache(maxsize=1)
def _memory_params():
    """(tile_bytes_target, vmem_limit_bytes) for the current TPU generation."""
    vmem_bytes = 64 * 1024 * 1024                       # conservative default (v7x)
    try:
        info = pltpu.get_tpu_info()
        vmem_bytes = int(getattr(info, "vmem_capacity_bytes", vmem_bytes)) or vmem_bytes
    except Exception:
        pass
    if vmem_bytes >= 96 * 1024 * 1024:                  # v5e / v6e: 128 MiB physical
        return 6 * 1024 * 1024, 96 * 1024 * 1024
    return 4 * 1024 * 1024, 48 * 1024 * 1024            # v7x: 64 MiB physical


def _inv_norm(xf, axis, power):
    """f32 reciprocal norm: (sum(xf**p, axis, keepdims=True)) ** (-1/p)."""
    if power == 2.0:
        return lax.rsqrt(jnp.sum(xf * xf, axis=axis, keepdims=True))   # EUP rsqrt
    if power.is_integer():
        s = jnp.sum(xf ** int(power), axis=axis, keepdims=True)        # integer_pow
    else:
        s = jnp.sum(xf ** power, axis=axis, keepdims=True)             # matches x.pow(p)
    return s ** (-1.0 / power)


# ---------------------------------------------------------------------------
# Kernels
# ---------------------------------------------------------------------------

def _lane_kernel(x_ref, o_ref, *, power):
    # Block (tm, D): reduce over the lane (last) axis; scale in the input dtype.
    inv = _inv_norm(x_ref[...].astype(jnp.float32), -1, power)
    o_ref[...] = x_ref[...] * inv.astype(o_ref.dtype)


def _sublane_kernel(x_ref, o_ref, *, power):
    # Block (tb, C, ts): reduce over the (full) middle axis; lanes stay dense.
    inv = _inv_norm(x_ref[...].astype(jnp.float32), 1, power)
    o_ref[...] = x_ref[...] * inv.astype(o_ref.dtype)


def _lane_norm_acc_kernel(x_ref, inv_ref, *, power, d_total, td):
    # Huge-D pass 1: accumulate sum(x**p) over D tiles into the (tm, 1) f32 output
    # block (resident across the k axis), then finalize to s**(-1/p).
    k = pl.program_id(1)

    @pl.when(k == 0)
    def _():
        inv_ref[...] = jnp.zeros_like(inv_ref)

    x = x_ref[...].astype(jnp.float32)
    col = lax.broadcasted_iota(jnp.int32, x.shape, 1) + k * td
    x = jnp.where(col < d_total, x, 0.0)          # mask padded tail of the last block
    if power == 2.0:
        inv_ref[...] += jnp.sum(x * x, axis=-1, keepdims=True)
    elif power.is_integer():
        inv_ref[...] += jnp.sum(x ** int(power), axis=-1, keepdims=True)
    else:
        inv_ref[...] += jnp.sum(x ** power, axis=-1, keepdims=True)

    @pl.when(k == pl.num_programs(1) - 1)
    def _():
        s = inv_ref[...]
        inv_ref[...] = lax.rsqrt(s) if power == 2.0 else s ** (-1.0 / power)


def _lane_scale_kernel(x_ref, inv_ref, o_ref):
    # Huge-D pass 2: out = x * inv (broadcast over lanes), in the input dtype.
    o_ref[...] = x_ref[...] * inv_ref[...].astype(o_ref.dtype)


# ---------------------------------------------------------------------------
# Wrappers
# ---------------------------------------------------------------------------

def _pick_rows(m, row_bytes, sub, tile_bytes):
    """Row tile (multiple of `sub`) within the byte budget; forces >= 2 grid steps
    for arrays larger than _MIN_SPLIT_BYTES so both v7x TensorCores get work."""
    tm = max(1, tile_bytes // max(row_bytes, 1))
    tm = max(sub, (tm // sub) * sub)
    if m * row_bytes > _MIN_SPLIT_BYTES and m > sub:
        tm = min(tm, max(sub, ((m - 1) // sub) * sub))   # guarantees cdiv(m, tm) >= 2
    return min(tm, m)


def _normalize_lanes(x2d, power):
    """Normalize each row of (M, D) along D (lane reduction)."""
    M, D = x2d.shape
    itemsize = jnp.dtype(x2d.dtype).itemsize
    sub = max(8, 32 // itemsize)             # 8 for f32, 16 for bf16, 32 for int8/fp8
    tile_target, vmem_limit = _memory_params()
    row_bytes = D * itemsize
    if sub * row_bytes > tile_target:
        # Even the minimum-height single-pass block would blow the (v7x) VMEM
        # budget -> D-tiled two-pass reduction.
        return _normalize_lanes_two_pass(x2d, power, tile_target, vmem_limit, sub)
    tm = _pick_rows(M, row_bytes, sub, tile_target)
    return pl.pallas_call(
        functools.partial(_lane_kernel, power=power),
        out_shape=jax.ShapeDtypeStruct((M, D), x2d.dtype),
        grid=(pl.cdiv(M, tm),),
        in_specs=[pl.BlockSpec((tm, D), lambda i: (i, 0))],
        out_specs=pl.BlockSpec((tm, D), lambda i: (i, 0)),
        compiler_params=pltpu.CompilerParams(
            dimension_semantics=("parallel",),
            vmem_limit_bytes=vmem_limit),
    )(x2d)


def _normalize_lanes_two_pass(x2d, power, tile_target, vmem_limit, sub):
    """Huge-D path: pass 1 accumulates sum(x**p) over D tiles, pass 2 scales."""
    M, D = x2d.shape
    itemsize = jnp.dtype(x2d.dtype).itemsize
    tm = sub
    td = max(_LANE, (tile_target // (tm * itemsize)) // _LANE * _LANE)
    td = min(td, ((D + _LANE - 1) // _LANE) * _LANE)
    grid = (pl.cdiv(M, tm), pl.cdiv(D, td))

    inv = pl.pallas_call(
        functools.partial(_lane_norm_acc_kernel, power=power, d_total=D, td=td),
        out_shape=jax.ShapeDtypeStruct((M, 1), jnp.float32),
        grid=grid,
        in_specs=[pl.BlockSpec((tm, td), lambda i, k: (i, k))],
        out_specs=pl.BlockSpec((tm, 1), lambda i, k: (i, 0)),
        compiler_params=pltpu.CompilerParams(
            dimension_semantics=("parallel", "arbitrary"),
            vmem_limit_bytes=vmem_limit),
    )(x2d)

    return pl.pallas_call(
        _lane_scale_kernel,
        out_shape=jax.ShapeDtypeStruct((M, D), x2d.dtype),
        grid=grid,
        in_specs=[pl.BlockSpec((tm, td), lambda i, k: (i, k)),
                  pl.BlockSpec((tm, 1), lambda i, k: (i, 0))],
        out_specs=pl.BlockSpec((tm, td), lambda i, k: (i, k)),
        compiler_params=pltpu.CompilerParams(
            dimension_semantics=("parallel", "parallel"),
            vmem_limit_bytes=vmem_limit),
    )(x2d, inv)


def _normalize_sublanes(x3d, power):
    """Normalize (B, C, S) along C (sublane reduction), keeping S lane-dense."""
    B, C, S = x3d.shape
    itemsize = jnp.dtype(x3d.dtype).itemsize
    sub = max(8, 32 // itemsize)
    tile_target, vmem_limit = _memory_params()
    c_pad = ((C + sub - 1) // sub) * sub      # sublane-padded footprint of the C axis

    if c_pad * _LANE * itemsize > tile_target:
        # Pathological channel extent: even a (1, C, 128) block blows the budget.
        # TODO(synk): a dedicated C-tiled two-pass sublane kernel would avoid this
        # HBM transpose round-trip; only reachable for very large C.
        xt = jnp.moveaxis(x3d, 1, 2).reshape((-1, C))
        out = _normalize_lanes(xt, power).reshape((B, S, C))
        return jnp.moveaxis(out, 2, 1)

    if S <= _LANE:
        ts = S                                           # full extent -> legal block dim
    else:
        max_ts = max(_LANE, (tile_target // (c_pad * itemsize)) // _LANE * _LANE)
        ts = min(((S + _LANE - 1) // _LANE) * _LANE, max_ts)
    ts_pad = max(_LANE, ((ts + _LANE - 1) // _LANE) * _LANE)
    tb = min(B, max(1, tile_target // (c_pad * ts_pad * itemsize)))

    # Keep both v7x TensorCores busy: >= 2 grid steps for arrays above ~2 MiB.
    if (B * C * S * itemsize > _MIN_SPLIT_BYTES
            and pl.cdiv(B, tb) * pl.cdiv(S, ts) < 2):
        if B > 1:
            tb = (B + 1) // 2
        elif S > _LANE:
            ts = max(_LANE, (((S + 1) // 2 + _LANE - 1) // _LANE) * _LANE)

    grid = (pl.cdiv(B, tb), pl.cdiv(S, ts))
    return pl.pallas_call(
        functools.partial(_sublane_kernel, power=power),
        out_shape=jax.ShapeDtypeStruct((B, C, S), x3d.dtype),
        grid=grid,
        in_specs=[pl.BlockSpec((tb, C, ts), lambda i, j: (i, 0, j))],
        out_specs=pl.BlockSpec((tb, C, ts), lambda i, j: (i, 0, j)),
        compiler_params=pltpu.CompilerParams(
            dimension_semantics=("parallel", "parallel"),
            vmem_limit_bytes=vmem_limit),
    )(x3d)


def normalize(x: jax.Array, dim: int = 1, power: float = 2.0) -> jax.Array:
    """JAX/Pallas equivalent of the PyTorch `Normalize(dim, power)` module."""
    power = float(power)
    ndim = x.ndim
    dim = dim % ndim
    shape = x.shape

    trailing = 1
    for s in shape[dim + 1:]:
        trailing *= s

    if dim == ndim - 1 or trailing == 1:
        # Reduction axis is (effectively) the minor axis: free reshape to (M, C)
        # keeps DMAs/stores lane-dense (avoids 1-lane masked vst for (..., C, 1, 1)).
        C = shape[dim]
        return _normalize_lanes(x.reshape((-1, C)), power).reshape(shape)

    # Interior axis: view as (B, C, S) with C = reduction axis, S lane-dense.
    B = 1
    for s in shape[:dim]:
        B *= s
    out3d = _normalize_sublanes(x.reshape((B, shape[dim], trailing)), power)
    return out3d.reshape(shape)


def _reference(x, dim, power):
    norm = jnp.sum(jnp.power(x, power), axis=dim, keepdims=True) ** (1.0 / power)
    return x / norm


if __name__ == "__main__":
    # Canonical usage: feature embeddings (batch, feat_dim), normalize dim=1.
    x = jax.random.normal(jax.random.PRNGKey(0), (16, 128), dtype=jnp.float32)
    out = jax.block_until_ready(normalize(x, dim=1, power=2.0))
    assert out.shape == x.shape and out.dtype == x.dtype
    assert jnp.max(jnp.abs(out - _reference(x, 1, 2.0))) < 2e-5

    # Higher-rank input, interior dim (NCHW-like) -> sublane-reduction path.
    x4 = jax.random.normal(jax.random.PRNGKey(1), (2, 4, 16, 16), dtype=jnp.float32)
    out4 = jax.block_until_ready(normalize(x4, dim=1, power=2.0))
    assert jnp.max(jnp.abs(out4 - _reference(x4, 1, 2.0))) < 2e-5

    # Non-default (even integer) power, ragged last dim, last-axis reduction.
    x3 = jax.random.normal(jax.random.PRNGKey(2), (3, 8, 40), dtype=jnp.float32)
    out3 = jax.block_until_ready(normalize(x3, dim=2, power=4.0))
    assert jnp.max(jnp.abs(out3 - _reference(x3, 2, 4.0))) < 2e-5

    # Trailing-singleton shape (N, C, 1, 1): routed to the lane-dense path.
    x1 = jax.random.normal(jax.random.PRNGKey(3), (2, 32, 1, 1), dtype=jnp.float32)
    out1 = jax.block_until_ready(normalize(x1, dim=1, power=2.0))
    assert jnp.max(jnp.abs(out1 - _reference(x1, 1, 2.0))) < 2e-5

    # Exercise the huge-D two-pass path at a small shape by forcing a tiny tile
    # budget (D tiled into 128-lane chunks; masked partial tail block).
    xw = jax.random.normal(jax.random.PRNGKey(4), (8, 300), dtype=jnp.float32)
    out_tp = jax.block_until_ready(
        _normalize_lanes_two_pass(xw, 2.0, tile_target=8 * _LANE * 4,
                                  vmem_limit=_memory_params()[1], sub=8))
    assert jnp.max(jnp.abs(out_tp - _reference(xw, 1, 2.0))) < 2e-5

    print("KERNEL_OK")
</pallas_src>

<mosaic_0001>
module attributes {stable_mosaic.version = 11 : i64} {
  func.func @_lane_kernel(%arg0: i32, %arg1: memref<16x128xf32, #tpu.memory_space<vmem>>, %arg2: memref<16x128xf32, #tpu.memory_space<vmem>>) attributes {dimension_semantics = [#tpu.dimension_semantics<parallel>], iteration_bounds = array<i64: 1>, scalar_prefetch = 0 : i64, scratch_operands = 0 : i64, tpu.core_type = #tpu.core_type<tc>, window_params = [{transform_indices = @transform_0, window_bounds = array<i64: 16, 128>}, {transform_indices = @transform_1, window_bounds = array<i64: 16, 128>}]} {
    %c0 = arith.constant 0 : index
    %c0_0 = arith.constant 0 : index
    %0 = vector.load %arg1[%c0, %c0_0] : memref<16x128xf32, #tpu.memory_space<vmem>>, vector<16x128xf32>
    %1 = arith.mulf %0, %0 : vector<16x128xf32>
    %cst = arith.constant dense<0.000000e+00> : vector<16xf32>
    %2 = vector.multi_reduction <add>, %1, %cst [1] : vector<16x128xf32> to vector<16xf32>
    %3 = vector.shape_cast %2 : vector<16xf32> to vector<16x1xf32>
    %4 = math.rsqrt %3 : vector<16x1xf32>
    %c0_1 = arith.constant 0 : index
    %c0_2 = arith.constant 0 : index
    %5 = vector.load %arg1[%c0_1, %c0_2] : memref<16x128xf32, #tpu.memory_space<vmem>>, vector<16x128xf32>
    %6 = vector.broadcast %4 : vector<16x1xf32> to vector<16x128xf32>
    %7 = arith.mulf %5, %6 : vector<16x128xf32>
    %c0_3 = arith.constant 0 : index
    %c0_4 = arith.constant 0 : index
    %8 = vector.load %arg2[%c0_3, %c0_4] : memref<16x128xf32, #tpu.memory_space<vmem>>, vector<16x128xf32>
    tpu.vector_store %arg2[%c0_3, %c0_4], %7 {strides = array<i32>} : memref<16x128xf32, #tpu.memory_space<vmem>>, vector<16x128xf32>,
    return
  }
  func.func @transform_0(%arg0: i32) -> (i32, i32) {
    %c0_i32 = arith.constant 0 : i32
    %c0_i32_0 = arith.constant 0 : i32
    return %arg0, %c0_i32 : i32, i32
  }
  func.func @transform_1(%arg0: i32) -> (i32, i32) {
    %c0_i32 = arith.constant 0 : i32
    %c0_i32_0 = arith.constant 0 : i32
    return %arg0, %c0_i32 : i32, i32
  }
}

</mosaic_0001>

<llo_original>
// kernel: tpu_custom_call.1
$region0: #{tpu_custom_call.1}
  #allocation0 [shape = 'u32[]', space=smem, size = 0x4, offset = 0x4, fixed_abs, tag = 'smem constant byte address 0x4 - core index']
  #allocation1 [shape = 'u32[144,128]{1,0:T(1,128)}', space=vmem, size = 0x12000, scoped, tag = 'internal scratch']
  %s0 = inlined_call_operand.hbm [shape: f32[16,128], index: 0, kind: input, shape index: {}]
  %s1 = inlined_call_operand.hbm [shape: f32[16,128], index: 1, kind: output, shape index: {}]
  %s2 = sld [smem:[#allocation0]]
  $region18: #{tpu_custom_call.1} parent=0
    _
  %s4 = ssub.s32 1, %s2
  %s5 = scalar_select 0, %s4, %s2
  $region1: #{tpu_custom_call.1} parent=0
    #allocation2 [shape = 'u8[8192]{0}', space=vmem, size = 0x2000, scoped, tag = 'input window, operand 0, single buffered']
    #allocation3 [shape = 's32[1]{0}', space=sflag, size = 0x4, scoped, tag = 'scoped memory for tpu_custom_call.1']
    #allocation4 [shape = 's32[1]{0}', space=sflag, size = 0x4, scoped, tag = 'scoped memory for tpu_custom_call.1']
    #allocation5 [shape = 'u8[8192]{0}', space=vmem, size = 0x2000, scoped, tag = 'output window, operand 0, single buffered']
    %6 = vsyncpa [#allocation3], 0
    %7 = vsyncpa [#allocation4], 0
    // Predicated region
    $region2: #{tpu_custom_call.1} parent=1 // pred_check
      _
    $region3: #{tpu_custom_call.1} parent=1 // pred_check_branch
      %9 = sbr.rel (0) target = $region5
    $region4: #{tpu_custom_call.1} parent=1 // pred_region
      %s11 = ssub.s32 256, 256
      %12 = vsyncadd [#allocation3], %s11
      %s13 = sshll.u32 [#allocation2], 4
      %s14 = int_to_ptr.vmem [resolvable:$true] %s13
      %19 = dma.hbm_to_vmem [thread:$0]  %s0, 256, %s14, [#allocation3], 128, 128, 8
    $region5: #{tpu_custom_call.1} parent=1 // pred_fallthru
      _
    // Predicated region
    $region6: #{tpu_custom_call.1} parent=1 // pred_check
      _
    $region7: #{tpu_custom_call.1} parent=1 // pred_check_branch
      %21 = sbr.rel (0) target = $region9
    $region8: #{tpu_custom_call.1} parent=1 // pred_region
      %22 = dma.done [#allocation3], 256
    $region9: #{tpu_custom_call.1} parent=1 // pred_fallthru
      _
    %v23 = vld [vmem:[#allocation2] sm:$0xff]
    %v24 = vld [vmem:[#allocation2 + $0x8] sm:$0xff]
    %v25 = vmul.f32 %v23, %v23
    %v26 = vmul.f32 %v24, %v24
    %27 = vadd.xlane.f32.xlu0 %v25
    %v28 = vpop.xlane.xlu0 %27
    %29 = vadd.xlane.f32.xlu0 %v26
    %v30 = vpop.xlane.xlu0 %29
    %v31 = vrsqrt.pop %v28
    %v32 = vrsqrt.pop %v30
    %v33 = vmul.f32 %v23, %v31
    %v34 = vmul.f32 %v24, %v32
    %35 = vst [vmem:[#allocation5] sm:$0xff] %v33
    %36 = vst [vmem:[#allocation5 + $0x8] sm:$0xff] %v34
    // Predicated region
    $region10: #{tpu_custom_call.1} parent=1 // pred_check
      _
    $region11: #{tpu_custom_call.1} parent=1 // pred_check_branch
      %38 = sbr.rel (0) target = $region13
    $region12: #{tpu_custom_call.1} parent=1 // pred_region
      %s40 = ssub.s32 256, 256
      %41 = vsyncadd [#allocation4], %s40
      %s42 = sshll.u32 [#allocation5], 4
      %s43 = int_to_ptr.vmem [resolvable:$true] %s42
      %48 = dma.vmem_to_hbm [thread:$0]  %s43, 256, %s1, [#allocation4], 128, 128, 8
    $region13: #{tpu_custom_call.1} parent=1 // pred_fallthru
      _
    // Predicated region
    $region14: #{tpu_custom_call.1} parent=1 // pred_check
      _
    $region15: #{tpu_custom_call.1} parent=1 // pred_check_branch
      %50 = sbr.rel (0) target = $region17
    $region16: #{tpu_custom_call.1} parent=1 // pred_region
      %51 = dma.done [#allocation4], 256
    $region17: #{tpu_custom_call.1} parent=1 // pred_fallthru
      _
    %52 = vsyncpa [#allocation3], 1
    %53 = vsyncpa [#allocation4], 1

</llo_original>
